<compile_context>
chip_gen: v6e
topology: v6e:2x2x1
jax: 0.10.0
libtpu: 0.0.40
codegen_flags: <defaults>
</compile_context>

<pallas_src>
import functools

import jax
import jax.numpy as jnp
import numpy as np
from jax.experimental import pallas as pl
from jax.experimental.pallas import tpu as pltpu

_MIB = 1024 * 1024


def _round_up(a, m):
    return (a + m - 1) // m * m


def _cdiv(a, b):
    return -(-a // b)


def _device_info():
    """(vmem_capacity, default_scoped_vmem, n_tensorcores, base_tile) per chip gen."""
    kind = ""
    try:
        kind = jax.devices()[0].device_kind.lower()
    except Exception:
        pass
    # Conservative default (v7x-like): 64 MiB VMEM, 2 TCs, small base tile.
    vmem, scoped, n_cores, base_tile = 64 * _MIB, 16 * _MIB, 2, 256
    if "v5" in kind and ("lite" in kind or "5e" in kind):
        vmem, scoped, n_cores, base_tile = 128 * _MIB, 16 * _MIB, 1, 512
    elif "v6" in kind:
        vmem, scoped, n_cores, base_tile = 128 * _MIB, 32 * _MIB, 1, 512
    elif "7" in kind:
        vmem, scoped, n_cores, base_tile = 64 * _MIB, 32 * _MIB, 2, 256
    elif "v4" in kind or ("v5" in kind and "p" in kind):
        vmem, scoped, n_cores, base_tile = 128 * _MIB, 16 * _MIB, 2, 512
    try:
        vmem = int(pltpu.get_tpu_info().vmem_capacity_bytes)
    except Exception:
        pass
    return vmem, scoped, n_cores, base_tile


def _silu(z, approx):
    # sigmoid via EUP exp + reciprocal; approx=True keeps the reciprocal in the
    # otherwise-idle EUP slot (perf path), approx=False for exact f32 checks.
    return z * pl.reciprocal(1.0 + jnp.exp(-z), approx=approx)


def gated_equivariant_kernel(
    x_ref,      # (TN, Hp)
    v_ref,      # (3, TN, Hp)        spatial axis first
    w12_ref,    # (Hp, Hp + Op)      [vec1_proj | vec2_proj] column-concatenated
    wux_ref,    # (Hp, Ip)           update_net[0] rows acting on x
    wuv_ref,    # (Hp, Ip)           update_net[0] rows acting on vec1
    bu1_ref,    # (1, Ip)            f32
    wu2_ref,    # (Ip, 2*Op)         update_net[2], fused [x_out | gate]
    bu2_ref,    # (1, 2*Op)          f32
    xo_ref,     # (TN, Op)
    vo_ref,     # (3, TN, Op)
    *,
    scalar_activation,
    approx,
):
    tn, hp = x_ref.shape
    op = xo_ref.shape[-1]

    # Layout-preserving collapse (tn % 8 == 0): one large-M MXU call does both
    # vec1_proj and vec2_proj for all 3 spatial components.
    v2d = v_ref[...].reshape(3 * tn, hp)
    p = jnp.dot(v2d, w12_ref[...], preferred_element_type=jnp.float32)  # (3TN, Hp+Op) f32
    p1 = p[:, :hp].reshape(3, tn, hp)                     # lane-aligned (Hp % 128 == 0)
    vec2 = p[:, hp:].reshape(3, tn, op).astype(vo_ref.dtype)  # cast down early

    # || vec1_proj(v) || over the spatial axis, in f32 (exact forward match).
    vec1 = jnp.sqrt(jnp.sum(p1 * p1, axis=0))             # (TN, Hp)

    # update_net[0] on cat([x, vec1], -1) expressed as two matmuls (no concat).
    h = (jnp.dot(x_ref[...], wux_ref[...], preferred_element_type=jnp.float32)
         + jnp.dot(vec1.astype(wuv_ref.dtype), wuv_ref[...],
                   preferred_element_type=jnp.float32)
         + bu1_ref[...])                                   # (TN, Ip) f32
    h = _silu(h, approx).astype(wu2_ref.dtype)

    # update_net[2]: single fused matmul; split at column Op is lane-aligned.
    u = jnp.dot(h, wu2_ref[...], preferred_element_type=jnp.float32) + bu2_ref[...]
    x_out = u[:, :op]
    v_gate = u[:, op:]

    if scalar_activation:
        x_out = _silu(x_out, approx)

    xo_ref[...] = x_out.astype(xo_ref.dtype)
    vo_ref[...] = v_gate.astype(vo_ref.dtype)[None, :, :] * vec2


# ------------------------- parameter packing (done once) -------------------------

def pack_params(params, hidden_channels, out_channels, *, compute_dtype=jnp.bfloat16):
    """Pad / split / cast the block's weights once. Reuse the result across calls."""
    H, O = hidden_channels, out_channels
    I = params["wu1"].shape[1]
    cd = jnp.dtype(compute_dtype)
    Hp, Ip, Op = _round_up(H, 128), _round_up(I, 128), _round_up(O, 128)

    w12 = jnp.zeros((Hp, Hp + Op), cd)
    w12 = w12.at[:H, :H].set(params["w1"].astype(cd))              # vec1_proj
    w12 = w12.at[:H, Hp:Hp + O].set(params["w2"].astype(cd))       # vec2_proj

    # update_net[0]: rows [0:H] act on x, rows [H:2H] on vec1 (concat order [x, vec1]).
    wux = jnp.zeros((Hp, Ip), cd).at[:H, :I].set(params["wu1"][:H].astype(cd))
    wuv = jnp.zeros((Hp, Ip), cd).at[:H, :I].set(params["wu1"][H:].astype(cd))
    bu1 = jnp.zeros((1, Ip), jnp.float32).at[0, :I].set(params["bu1"].astype(jnp.float32))

    # update_net[2]: fused, columns [0:O] -> scalar out, [Op:Op+O] -> vector gate.
    wu2 = jnp.zeros((Ip, 2 * Op), cd)
    wu2 = wu2.at[:I, :O].set(params["wu2"][:, :O].astype(cd))
    wu2 = wu2.at[:I, Op:Op + O].set(params["wu2"][:, O:].astype(cd))
    bu2 = jnp.zeros((1, 2 * Op), jnp.float32)
    bu2 = bu2.at[0, :O].set(params["bu2"][:O].astype(jnp.float32))
    bu2 = bu2.at[0, Op:Op + O].set(params["bu2"][O:].astype(jnp.float32))

    return {"w12": w12, "wux": wux, "wuv": wuv, "bu1": bu1, "wu2": wu2, "bu2": bu2,
            "dims": (H, I, O, Hp, Ip, Op), "compute_dtype": cd}


# ------------------------- forward wrappers -------------------------

def gated_equivariant_block_3nh(x, v3, packed, *, scalar_activation=False,
                                tile_n=None, approx_silu=None, out_dtype=None):
    """Kernel-native entry point.

    x  : (N, H)     scalar features
    v3 : (3, N, H)  vector features, spatial axis first
    packed : output of pack_params()
    Returns x_out: (N, O), v_out: (3, N, O).
    """
    H, I, O, Hp, Ip, Op = packed["dims"]
    cd = packed["compute_dtype"]
    N = x.shape[0]
    assert x.shape == (N, H) and v3.shape == (3, N, H)
    out_dtype = jnp.dtype(out_dtype) if out_dtype is not None else x.dtype
    if approx_silu is None:
        approx_silu = (cd == jnp.dtype(jnp.bfloat16))

    vmem_cap, scoped_default, n_cores, base_tile = _device_info()

    # Balanced node tiling: minimize pad waste, keep >=2 steps on 2-TC chips.
    if tile_n is None:
        grid_steps = max(1, _cdiv(N, base_tile))
        if n_cores > 1:
            grid_steps = max(grid_steps, min(n_cores, max(1, _round_up(N, 8) // 8)))
        tile_n = _round_up(_cdiv(N, grid_steps), 8)
    else:
        tile_n = max(8, _round_up(int(tile_n), 8))
        grid_steps = _cdiv(N, tile_n)
    Np = tile_n * grid_steps

    # --- pad & cast streamed operands only when needed (zero padding is exact) ---
    if Np == N and Hp == H:
        x_p = x.astype(cd)
        v_p = v3.astype(cd)
    else:
        x_p = jnp.pad(x.astype(cd), ((0, Np - N), (0, Hp - H)))
        v_p = jnp.pad(v3.astype(cd), ((0, 0), (0, Np - N), (0, Hp - H)))

    kernel = functools.partial(gated_equivariant_kernel,
                               scalar_activation=scalar_activation,
                               approx=bool(approx_silu))

    const = lambda i: (0, 0)
    b_cd = jnp.dtype(cd).itemsize
    b_out = jnp.dtype(out_dtype).itemsize

    # Per-step VMEM estimate: single-buffered weights + double-buffered I/O + f32 temps.
    weight_bytes = (Hp * (Hp + Op) + 2 * Hp * Ip + Ip * 2 * Op) * b_cd + (Ip + 2 * Op) * 4
    io_bytes = 2 * (4 * tile_n * Hp * b_cd + 4 * tile_n * Op * b_out)
    tmp_bytes = 4 * tile_n * (3 * (Hp + Op) + Hp + Ip + 2 * Op) + 3 * tile_n * Op * b_out
    est = weight_bytes + io_bytes + tmp_bytes
    vmem_limit = None
    if est > scoped_default:
        vmem_limit = max(scoped_default, min(int(est * 1.25), vmem_cap - 8 * _MIB))

    # Advisory cost estimate so XLA overlaps surrounding ops with this call.
    flops = Np * (6 * Hp * (Hp + Op) + 4 * Hp * Ip + 4 * Ip * Op)
    transcendentals = Np * (Ip + (Op if scalar_activation else 0))
    bytes_accessed = 4 * Np * Hp * b_cd + 4 * Np * Op * b_out + weight_bytes
    cost = pl.CostEstimate(flops=flops, transcendentals=transcendentals,
                           bytes_accessed=bytes_accessed)

    x_out, v_out = pl.pallas_call(
        kernel,
        out_shape=(
            jax.ShapeDtypeStruct((Np, Op), out_dtype),
            jax.ShapeDtypeStruct((3, Np, Op), out_dtype),
        ),
        grid_spec=pltpu.PrefetchScalarGridSpec(
            num_scalar_prefetch=0,
            grid=(grid_steps,),
            in_specs=[
                pl.BlockSpec((tile_n, Hp), lambda i: (i, 0)),        # x (streamed)
                pl.BlockSpec((3, tile_n, Hp), lambda i: (0, i, 0)),  # v (streamed)
                # Constant weight/bias blocks: single-buffered (no re-DMA, half VMEM).
                pl.BlockSpec((Hp, Hp + Op), const, pipeline_mode=pl.Buffered(1)),
                pl.BlockSpec((Hp, Ip), const, pipeline_mode=pl.Buffered(1)),
                pl.BlockSpec((Hp, Ip), const, pipeline_mode=pl.Buffered(1)),
                pl.BlockSpec((1, Ip), const, pipeline_mode=pl.Buffered(1)),
                pl.BlockSpec((Ip, 2 * Op), const, pipeline_mode=pl.Buffered(1)),
                pl.BlockSpec((1, 2 * Op), const, pipeline_mode=pl.Buffered(1)),
            ],
            out_specs=[
                pl.BlockSpec((tile_n, Op), lambda i: (i, 0)),
                pl.BlockSpec((3, tile_n, Op), lambda i: (0, i, 0)),
            ],
        ),
        compiler_params=pltpu.CompilerParams(
            dimension_semantics=("parallel",),   # node axis -> megacore split
            vmem_limit_bytes=vmem_limit,
        ),
        cost_estimate=cost,
    )(x_p, v_p, packed["w12"], packed["wux"], packed["wuv"], packed["bu1"],
      packed["wu2"], packed["bu2"])

    if Np == N and Op == O:
        return x_out, v_out
    return x_out[:N, :O], v_out[:, :N, :O]


def gated_equivariant_block(x, v, packed, **kwargs):
    """PyTorch-layout entry point: x (N,H), v (N,3,H) -> x_out (N,O), v_out (N,3,O).

    Chained blocks should call gated_equivariant_block_3nh directly to keep the
    (3, N, H) layout between layers and avoid these two HBM transposes.
    """
    xo, vo3 = gated_equivariant_block_3nh(x, jnp.transpose(v, (1, 0, 2)), packed, **kwargs)
    return xo, jnp.transpose(vo3, (1, 0, 2))


# ------------------------- parameters & reference -------------------------

def xavier_uniform(key, fan_in, fan_out, dtype=jnp.float32):
    # Matches torch.nn.init.xavier_uniform_ on a (fan_out, fan_in) Linear weight;
    # stored transposed as (fan_in, fan_out) so matmul is y = x @ W.
    limit = float(np.sqrt(6.0 / (fan_in + fan_out)))
    return jax.random.uniform(key, (fan_in, fan_out), dtype, -limit, limit)


def init_params(key, hidden_channels, out_channels, intermediate_channels=None):
    if intermediate_channels is None:
        intermediate_channels = hidden_channels
    H, O, I = hidden_channels, out_channels, intermediate_channels
    k1, k2, k3, k4 = jax.random.split(key, 4)
    return {
        "w1": xavier_uniform(k1, H, H),            # vec1_proj (no bias)
        "w2": xavier_uniform(k2, H, O),            # vec2_proj (no bias)
        "wu1": xavier_uniform(k3, 2 * H, I),       # update_net[0]
        "bu1": jnp.zeros((I,), jnp.float32),
        "wu2": xavier_uniform(k4, I, 2 * O),       # update_net[2]
        "bu2": jnp.zeros((2 * O,), jnp.float32),
    }


def reference_forward(x, v, params, out_channels, scalar_activation):
    # Pure-JAX reference mirroring the PyTorch module exactly (x:(N,H), v:(N,3,H)).
    vec1 = jnp.linalg.norm(jnp.einsum("nsh,hk->nsk", v, params["w1"]), axis=-2)
    vec2 = jnp.einsum("nsh,ho->nso", v, params["w2"])
    xc = jnp.concatenate([x, vec1], axis=-1)
    h = jax.nn.silu(xc @ params["wu1"] + params["bu1"])
    u = h @ params["wu2"] + params["bu2"]
    xo, vg = u[:, :out_channels], u[:, out_channels:]
    vo = vg[:, None, :] * vec2
    if scalar_activation:
        xo = jax.nn.silu(xo)
    return xo, vo


# TODO(synk): forward-only kernel; jnp.sqrt at zero vector norm would need an eps
# before differentiating through this block (matches the reference forward exactly).

if __name__ == "__main__":
    H, O = 32, 16
    scalar_activation = True

    key = jax.random.PRNGKey(0)
    kx, kv, kp = jax.random.split(key, 3)
    params = init_params(kp, H, O)

    # --- f32 path (exact operands), N = 16 ---
    N = 16
    x = jax.random.normal(kx, (N, H), jnp.float32)
    v = jax.random.normal(kv, (N, 3, H), jnp.float32)
    x_ref, v_ref = reference_forward(x, v, params, O, scalar_activation)

    packed_f32 = pack_params(params, H, O, compute_dtype=jnp.float32)
    x_out, v_out = gated_equivariant_block(
        x, v, packed_f32, scalar_activation=scalar_activation, approx_silu=False)
    jax.block_until_ready((x_out, v_out))
    np.testing.assert_allclose(np.asarray(x_out), np.asarray(x_ref), rtol=1e-5, atol=1e-5)
    np.testing.assert_allclose(np.asarray(v_out), np.asarray(v_ref), rtol=1e-5, atol=1e-5)

    # --- f32 path with non-multiple-of-8 N to exercise the row-padding path ---
    N2 = 20
    x2 = jax.random.normal(jax.random.PRNGKey(1), (N2, H), jnp.float32)
    v2 = jax.random.normal(jax.random.PRNGKey(2), (N2, 3, H), jnp.float32)
    x2_ref, v2_ref = reference_forward(x2, v2, params, O, scalar_activation)
    x2_out, v2_out = gated_equivariant_block(
        x2, v2, packed_f32, scalar_activation=scalar_activation, approx_silu=False)
    jax.block_until_ready((x2_out, v2_out))
    np.testing.assert_allclose(np.asarray(x2_out), np.asarray(x2_ref), rtol=1e-5, atol=1e-5)
    np.testing.assert_allclose(np.asarray(v2_out), np.asarray(v2_ref), rtol=1e-5, atol=1e-5)

    # --- bf16 MXU-operand perf path (default on v5e/v6e/v7x), loose check ---
    packed_bf16 = pack_params(params, H, O, compute_dtype=jnp.bfloat16)
    x_bf, v_bf = gated_equivariant_block(
        x, v, packed_bf16, scalar_activation=scalar_activation)
    jax.block_until_ready((x_bf, v_bf))
    np.testing.assert_allclose(np.asarray(x_bf), np.asarray(x_ref), rtol=1e-1, atol=1e-1)
    np.testing.assert_allclose(np.asarray(v_bf), np.asarray(v_ref), rtol=1e-1, atol=1e-1)

    print("KERNEL_OK")
</pallas_src>

<mosaic_0001>
module attributes {stable_mosaic.version = 11 : i64} {
  func.func @gated_equivariant_kernel(%arg0: i32, %arg1: memref<8x128xf32, #tpu.memory_space<vmem>>, %arg2: memref<3x8x128xf32, #tpu.memory_space<vmem>>, %arg3: memref<128x256xf32, #tpu.memory_space<vmem>>, %arg4: memref<128x128xf32, #tpu.memory_space<vmem>>, %arg5: memref<128x128xf32, #tpu.memory_space<vmem>>, %arg6: memref<1x128xf32, #tpu.memory_space<vmem>>, %arg7: memref<128x256xf32, #tpu.memory_space<vmem>>, %arg8: memref<1x256xf32, #tpu.memory_space<vmem>>, %arg9: memref<8x128xf32, #tpu.memory_space<vmem>>, %arg10: memref<3x8x128xf32, #tpu.memory_space<vmem>>) attributes {dimension_semantics = [#tpu.dimension_semantics<parallel>], iteration_bounds = array<i64: 2>, scalar_prefetch = 0 : i64, scratch_operands = 0 : i64, tpu.core_type = #tpu.core_type<tc>, window_params = [{transform_indices = @transform_0, window_bounds = array<i64: 8, 128>}, {transform_indices = @transform_1, window_bounds = array<i64: 3, 8, 128>}, {pipeline_mode = #tpu.pipeline_mode<synchronous>, transform_indices = @transform_2, window_bounds = array<i64: 128, 256>}, {pipeline_mode = #tpu.pipeline_mode<synchronous>, transform_indices = @transform_3, window_bounds = array<i64: 128, 128>}, {pipeline_mode = #tpu.pipeline_mode<synchronous>, transform_indices = @transform_4, window_bounds = array<i64: 128, 128>}, {pipeline_mode = #tpu.pipeline_mode<synchronous>, transform_indices = @transform_5, window_bounds = array<i64: 1, 128>}, {pipeline_mode = #tpu.pipeline_mode<synchronous>, transform_indices = @transform_6, window_bounds = array<i64: 128, 256>}, {pipeline_mode = #tpu.pipeline_mode<synchronous>, transform_indices = @transform_7, window_bounds = array<i64: 1, 256>}, {transform_indices = @transform_8, window_bounds = array<i64: 8, 128>}, {transform_indices = @transform_9, window_bounds = array<i64: 3, 8, 128>}]} {
    %c0 = arith.constant 0 : index
    %c0_0 = arith.constant 0 : index
    %c0_1 = arith.constant 0 : index
    %0 = vector.load %arg2[%c0, %c0_0, %c0_1] : memref<3x8x128xf32, #tpu.memory_space<vmem>>, vector<3x8x128xf32>
    %1 = vector.shape_cast %0 : vector<3x8x128xf32> to vector<24x128xf32>
    %c0_2 = arith.constant 0 : index
    %c0_3 = arith.constant 0 : index
    %2 = vector.load %arg3[%c0_2, %c0_3] : memref<128x256xf32, #tpu.memory_space<vmem>>, vector<128x256xf32>
    %cst = arith.constant dense<0.000000e+00> : vector<24x256xf32>
    %3 = tpu.matmul %1, %2, %cst {dimension_numbers = #tpu.dot_dimension_numbers<[1], [0], [0], [1], [0, 0, 1, 1], [], []>} : vector<24x128xf32>, vector<128x256xf32>, vector<24x256xf32> -> vector<24x256xf32>
    %4 = vector.extract_strided_slice %3 {offsets = [0, 0], sizes = [24, 128], strides = [1, 1]} : vector<24x256xf32> to vector<24x128xf32>
    %5 = vector.shape_cast %4 : vector<24x128xf32> to vector<3x8x128xf32>
    %6 = vector.extract_strided_slice %3 {offsets = [0, 128], sizes = [24, 128], strides = [1, 1]} : vector<24x256xf32> to vector<24x128xf32>
    %7 = vector.shape_cast %6 : vector<24x128xf32> to vector<3x8x128xf32>
    %8 = arith.mulf %5, %5 : vector<3x8x128xf32>
    %cst_4 = arith.constant dense<0.000000e+00> : vector<8x128xf32>
    %9 = vector.multi_reduction <add>, %8, %cst_4 [0] : vector<3x8x128xf32> to vector<8x128xf32>
    %10 = math.sqrt %9 : vector<8x128xf32>
    %c0_5 = arith.constant 0 : index
    %c0_6 = arith.constant 0 : index
    %11 = vector.load %arg1[%c0_5, %c0_6] : memref<8x128xf32, #tpu.memory_space<vmem>>, vector<8x128xf32>
    %c0_7 = arith.constant 0 : index
    %c0_8 = arith.constant 0 : index
    %12 = vector.load %arg4[%c0_7, %c0_8] : memref<128x128xf32, #tpu.memory_space<vmem>>, vector<128x128xf32>
    %cst_9 = arith.constant dense<0.000000e+00> : vector<8x128xf32>
    %13 = tpu.matmul %11, %12, %cst_9 {dimension_numbers = #tpu.dot_dimension_numbers<[1], [0], [0], [1], [0, 0, 1, 1], [], []>} : vector<8x128xf32>, vector<128x128xf32>, vector<8x128xf32> -> vector<8x128xf32>
    %c0_10 = arith.constant 0 : index
    %c0_11 = arith.constant 0 : index
    %14 = vector.load %arg5[%c0_10, %c0_11] : memref<128x128xf32, #tpu.memory_space<vmem>>, vector<128x128xf32>
    %cst_12 = arith.constant dense<0.000000e+00> : vector<8x128xf32>
    %15 = tpu.matmul %10, %14, %cst_12 {dimension_numbers = #tpu.dot_dimension_numbers<[1], [0], [0], [1], [0, 0, 1, 1], [], []>} : vector<8x128xf32>, vector<128x128xf32>, vector<8x128xf32> -> vector<8x128xf32>
    %16 = arith.addf %13, %15 : vector<8x128xf32>
    %c0_13 = arith.constant 0 : index
    %c0_14 = arith.constant 0 : index
    %17 = vector.load %arg6[%c0_13, %c0_14] : memref<1x128xf32, #tpu.memory_space<vmem>>, vector<1x128xf32>
    %18 = vector.broadcast %17 : vector<1x128xf32> to vector<8x128xf32>
    %19 = arith.addf %16, %18 : vector<8x128xf32>
    %cst_15 = arith.constant 0.000000e+00 : f32
    %20 = vector.broadcast %cst_15 : f32 to vector<8x128xf32>
    %21 = arith.subf %20, %19 : vector<8x128xf32>
    %22 = math.exp %21 : vector<8x128xf32>
    %cst_16 = arith.constant 1.000000e+00 : f32
    %23 = vector.broadcast %cst_16 : f32 to vector<8x128xf32>
    %24 = arith.addf %23, %22 : vector<8x128xf32>
    %25 = tpu.reciprocal %24 : vector<8x128xf32> -> vector<8x128xf32>
    %26 = arith.mulf %19, %25 : vector<8x128xf32>
    %c0_17 = arith.constant 0 : index
    %c0_18 = arith.constant 0 : index
    %27 = vector.load %arg7[%c0_17, %c0_18] : memref<128x256xf32, #tpu.memory_space<vmem>>, vector<128x256xf32>
    %cst_19 = arith.constant dense<0.000000e+00> : vector<8x256xf32>
    %28 = tpu.matmul %26, %27, %cst_19 {dimension_numbers = #tpu.dot_dimension_numbers<[1], [0], [0], [1], [0, 0, 1, 1], [], []>} : vector<8x128xf32>, vector<128x256xf32>, vector<8x256xf32> -> vector<8x256xf32>
    %c0_20 = arith.constant 0 : index
    %c0_21 = arith.constant 0 : index
    %29 = vector.load %arg8[%c0_20, %c0_21] : memref<1x256xf32, #tpu.memory_space<vmem>>, vector<1x256xf32>
    %30 = vector.broadcast %29 : vector<1x256xf32> to vector<8x256xf32>
    %31 = arith.addf %28, %30 : vector<8x256xf32>
    %32 = vector.extract_strided_slice %31 {offsets = [0, 0], sizes = [8, 128], strides = [1, 1]} : vector<8x256xf32> to vector<8x128xf32>
    %33 = vector.extract_strided_slice %31 {offsets = [0, 128], sizes = [8, 128], strides = [1, 1]} : vector<8x256xf32> to vector<8x128xf32>
    %cst_22 = arith.constant 0.000000e+00 : f32
    %34 = vector.broadcast %cst_22 : f32 to vector<8x128xf32>
    %35 = arith.subf %34, %32 : vector<8x128xf32>
    %36 = math.exp %35 : vector<8x128xf32>
    %cst_23 = arith.constant 1.000000e+00 : f32
    %37 = vector.broadcast %cst_23 : f32 to vector<8x128xf32>
    %38 = arith.addf %37, %36 : vector<8x128xf32>
    %39 = tpu.reciprocal %38 : vector<8x128xf32> -> vector<8x128xf32>
    %40 = arith.mulf %32, %39 : vector<8x128xf32>
    %c0_24 = arith.constant 0 : index
    %c0_25 = arith.constant 0 : index
    %41 = vector.load %arg9[%c0_24, %c0_25] : memref<8x128xf32, #tpu.memory_space<vmem>>, vector<8x128xf32>
    tpu.vector_store %arg9[%c0_24, %c0_25], %40 {strides = array<i32>} : memref<8x128xf32, #tpu.memory_space<vmem>>, vector<8x128xf32>,
    %42 = vector.shape_cast %33 : vector<8x128xf32> to vector<1x8x128xf32>
    %43 = vector.broadcast %42 : vector<1x8x128xf32> to vector<3x8x128xf32>
    %44 = arith.mulf %43, %7 : vector<3x8x128xf32>
    %c0_26 = arith.constant 0 : index
    %c0_27 = arith.constant 0 : index
    %c0_28 = arith.constant 0 : index
    %45 = vector.load %arg10[%c0_26, %c0_27, %c0_28] : memref<3x8x128xf32, #tpu.memory_space<vmem>>, vector<3x8x128xf32>
    tpu.vector_store %arg10[%c0_26, %c0_27, %c0_28], %44 {strides = array<i32>} : memref<3x8x128xf32, #tpu.memory_space<vmem>>, vector<3x8x128xf32>,
    return
  }
  func.func @transform_0(%arg0: i32) -> (i32, i32) {
    %c0_i32 = arith.constant 0 : i32
    %c0_i32_0 = arith.constant 0 : i32
    return %arg0, %c0_i32 : i32, i32
  }
  func.func @transform_1(%arg0: i32) -> (i32, i32, i32) {
    %c0_i32 = arith.constant 0 : i32
    %c0_i32_0 = arith.constant 0 : i32
    %c0_i32_1 = arith.constant 0 : i32
    return %c0_i32, %arg0, %c0_i32_0 : i32, i32, i32
  }
  func.func @transform_2(%arg0: i32) -> (i32, i32) {
    %c0_i32 = arith.constant 0 : i32
    %c0_i32_0 = arith.constant 0 : i32
    %c0_i32_1 = arith.constant 0 : i32
    return %c0_i32, %c0_i32_0 : i32, i32
  }
  func.func @transform_3(%arg0: i32) -> (i32, i32) {
    %c0_i32 = arith.constant 0 : i32
    %c0_i32_0 = arith.constant 0 : i32
    %c0_i32_1 = arith.constant 0 : i32
    return %c0_i32, %c0_i32_0 : i32, i32
  }
  func.func @transform_4(%arg0: i32) -> (i32, i32) {
    %c0_i32 = arith.constant 0 : i32
    %c0_i32_0 = arith.constant 0 : i32
    %c0_i32_1 = arith.constant 0 : i32
    return %c0_i32, %c0_i32_0 : i32, i32
  }
  func.func @transform_5(%arg0: i32) -> (i32, i32) {
    %c0_i32 = arith.constant 0 : i32
    %c0_i32_0 = arith.constant 0 : i32
    %c0_i32_1 = arith.constant 0 : i32
    return %c0_i32, %c0_i32_0 : i32, i32
  }
  func.func @transform_6(%arg0: i32) -> (i32, i32) {
    %c0_i32 = arith.constant 0 : i32
    %c0_i32_0 = arith.constant 0 : i32
    %c0_i32_1 = arith.constant 0 : i32
    return %c0_i32, %c0_i32_0 : i32, i32
  }
  func.func @transform_7(%arg0: i32) -> (i32, i32) {
    %c0_i32 = arith.constant 0 : i32
    %c0_i32_0 = arith.constant 0 : i32
    %c0_i32_1 = arith.constant 0 : i32
    return %c0_i32, %c0_i32_0 : i32, i32
  }
  func.func @transform_8(%arg0: i32) -> (i32, i32) {
    %c0_i32 = arith.constant 0 : i32
    %c0_i32_0 = arith.constant 0 : i32
    return %arg0, %c0_i32 : i32, i32
  }
  func.func @transform_9(%arg0: i32) -> (i32, i32, i32) {
    %c0_i32 = arith.constant 0 : i32
    %c0_i32_0 = arith.constant 0 : i32
    %c0_i32_1 = arith.constant 0 : i32
    return %c0_i32, %arg0, %c0_i32_0 : i32, i32, i32
  }
}

</mosaic_0001>

<llo_original>
// kernel: tpu_custom_call.1
$region0: #{tpu_custom_call.1}
  #allocation0 [shape = 'u32[]', space=smem, size = 0x4, offset = 0x4, fixed_abs, tag = 'smem constant byte address 0x4 - core index']
  #allocation1 [shape = 'u32[144,128]{1,0:T(1,128)}', space=vmem, size = 0x12000, scoped, tag = 'internal scratch']
  %s0 = inlined_call_operand.hbm [shape: f32[16,128], index: 0, kind: input, shape index: {}]
  %s1 = inlined_call_operand.hbm [shape: f32[3,16,128], index: 1, kind: input, shape index: {}]
  %s2 = inlined_call_operand.hbm [shape: f32[128,256], index: 2, kind: input, shape index: {}]
  %s3 = inlined_call_operand.hbm [shape: f32[128,128], index: 3, kind: input, shape index: {}]
  %s4 = inlined_call_operand.hbm [shape: f32[128,128], index: 4, kind: input, shape index: {}]
  %s5 = inlined_call_operand.vmem [shape: f32[1,128], index: 5, kind: input, shape index: {}]
  %s6 = inlined_call_operand.hbm [shape: f32[128,256], index: 6, kind: input, shape index: {}]
  %s7 = inlined_call_operand.vmem [shape: f32[1,256], index: 7, kind: input, shape index: {}]
  %s8 = inlined_call_operand.hbm [shape: f32[16,128], index: 8, kind: output, shape index: {0}]
  %s9 = inlined_call_operand.hbm [shape: f32[3,16,128], index: 9, kind: output, shape index: {1}]
  %10 = xla_tuple %s8, %s9
  %s11 = sld [smem:[#allocation0]]
  $region97: #{tpu_custom_call.1} parent=0
    _
  %s13 = ssub.s32 1, %s11
  %s14 = scalar_select 0, %s13, %s11
  $region1: #{tpu_custom_call.1} parent=0
    #allocation2 [shape = 'u8[8192]{0}', space=vmem, size = 0x2000, scoped, tag = 'input window, operand 0']
    #allocation3 [shape = 's32[2]{0}', space=sflag, size = 0x8, scoped, tag = 'scoped memory for tpu_custom_call.1']
    #allocation4 [shape = 's32[2]{0}', space=sflag, size = 0x8, scoped, tag = 'scoped memory for tpu_custom_call.1']
    #allocation5 [shape = 'u8[24576]{0}', space=vmem, size = 0x6000, scoped, tag = 'input window, operand 1']
    #allocation6 [shape = 's32[2]{0}', space=sflag, size = 0x8, scoped, tag = 'scoped memory for tpu_custom_call.1']
    #allocation7 [shape = 'u8[131072]{0}', space=vmem, size = 0x20000, scoped, tag = 'input window, operand 2, single buffered']
    #allocation8 [shape = 'u8[65536]{0}', space=vmem, size = 0x10000, scoped, tag = 'input window, operand 3, single buffered']
    #allocation9 [shape = 's32[1]{0}', space=sflag, size = 0x4, scoped, tag = 'scoped memory for tpu_custom_call.1']
    #allocation10 [shape = 'u8[65536]{0}', space=vmem, size = 0x10000, scoped, tag = 'input window, operand 4, single buffered']
    #allocation11 [shape = 'u8[131072]{0}', space=vmem, size = 0x20000, scoped, tag = 'input window, operand 6, single buffered']
    #allocation12 [shape = 's32[1]{0}', space=sflag, size = 0x4, scoped, tag = 'scoped memory for tpu_custom_call.1']
    #allocation13 [shape = 'u8[8192]{0}', space=vmem, size = 0x2000, scoped, tag = 'output window, operand 0']
    #allocation14 [shape = 'u8[24576]{0}', space=vmem, size = 0x6000, scoped, tag = 'output window, operand 1']
    #allocation15 [shape = 's32[2]{0}', space=sflag, size = 0x8, scoped, tag = 'scoped memory for tpu_custom_call.1']
    %15 = vsyncpa [#allocation3], 0
    %s16 = scalar_lea.sflag [#allocation3], 1
    %17 = vsyncpa %s16, 0
    %18 = vsyncpa [#allocation6], 0
    %s19 = scalar_lea.sflag [#allocation6], 1
    %20 = vsyncpa %s19, 0
    %21 = vsyncpa [#allocation9], 0
    %22 = vsyncpa [#allocation12], 0
    %23 = vsyncpa [#allocation4], 0
    %s24 = scalar_lea.sflag [#allocation4], 1
    %25 = vsyncpa %s24, 0
    %26 = vsyncpa [#allocation15], 0
    %s27 = scalar_lea.sflag [#allocation15], 1
    %28 = vsyncpa %s27, 0
    loop: start=0, step=1, limit=4
    $region2: #{tpu_custom_call.1} parent=1 // loop_pre_header
      _
    $region3: #{tpu_custom_call.1} parent=1 // loop_header
      %s30 = sphi 0, %s34
      %p31 = scmp.ge.s32.totalorder %s30, 4
      %s40 = sphi 0, %s42
      %s43 = sphi 0, %s40
      %s44 = sphi 0, %s43
      %s60 = sphi 0, %s44
      %s66 = sphi 0, %s68
      %s69 = sphi 0, %s66
      %s70 = sphi 0, %s69
      %s86 = sphi 0, %s70
      %s90 = sphi 0, %s90
      %s92 = sphi 0, %s90
      %s93 = sphi 0, %s92
      %s107 = sphi 0, %s93
      %s111 = sphi 0, %s111
      %s113 = sphi 0, %s111
      %s114 = sphi 0, %s113
      %s128 = sphi 0, %s114
      %s132 = sphi 0, %s132
      %s134 = sphi 0, %s132
      %s135 = sphi 0, %s134
      %s149 = sphi 0, %s135
      %s153 = sphi 0, %s153
      %s155 = sphi 0, %s153
      %s156 = sphi 0, %s155
      %s170 = sphi 0, %s156
      %s174 = sphi 0, %s174
      %s176 = sphi 0, %s174
      %s177 = sphi 0, %s176
      %s191 = sphi 0, %s177
      %s195 = sphi 0, %s195
      %s197 = sphi 0, %s195
      %s198 = sphi 0, %s197
      %s212 = sphi 0, %s198
      %s218 = sphi 0, %s220
      %s221 = sphi 0, %s218
      %s222 = sphi 0, %s221
      %s238 = sphi 0, %s222
      %s244 = sphi 0, %s246
      %s247 = sphi 0, %s244
      %s248 = sphi 0, %s247
      %s264 = sphi 0, %s248
    $region4: #{tpu_custom_call.1} parent=1 // loop_header_branch
      %33 = sbr.rel (%p31) target = $region8
    $region5: #{tpu_custom_call.1} parent=1 // loop_body
      %s35 = ssub.s32 %s30, 1
      %s36 = ssub.s32 %s30, 2
      %s37 = sadd.s32 %s30, 1
      %s38 = ssub.s32 %s30, %s37
      %p39 = scmp.eq.s32.totalorder %s38, 0
      %s41 = sadd.s32 %s40, 1
      %s42 = scalar_select %p39, %s40, %s41
      %p45 = pneg %p39
      %p46 = scmp.eq.s32.totalorder %s30, 1
      %p47 = por %p45, %p46
      %p48 = scmp.ne.s32.totalorder %s40, %s43
      %p49 = scmp.eq.s32.totalorder %s30, 0
      %p50 = por %p48, %p49
      %p51 = scmp.ne.s32.totalorder %s40, %s43
      %p52 = scmp.eq.s32.totalorder %s35, 1
      %p53 = por %p51, %p52
      %p54 = scmp.ne.s32.totalorder %s43, %s44
      %p55 = scmp.eq.s32.totalorder %s35, 0
      %p56 = por %p54, %p55
      %p57 = scmp.ne.s32.totalorder %s43, %s44
      %p58 = scmp.eq.s32.totalorder %s36, 1
      %p59 = por %p57, %p58
      %p61 = scmp.ne.s32.totalorder %s44, %s60
      %p62 = scmp.eq.s32.totalorder %s36, 0
      %p63 = por %p61, %p62
      %s64 = ssub.s32 %s30, %s37
      %p65 = scmp.eq.s32.totalorder %s64, 0
      %s67 = sadd.s32 %s66, 1
      %s68 = scalar_select %p65, %s66, %s67
      %p71 = pneg %p65
      %p72 = scmp.eq.s32.totalorder %s30, 1
      %p73 = por %p71, %p72
      %p74 = scmp.ne.s32.totalorder %s66, %s69
      %p75 = scmp.eq.s32.totalorder %s30, 0
      %p76 = por %p74, %p75
      %p77 = scmp.ne.s32.totalorder %s66, %s69
      %p78 = scmp.eq.s32.totalorder %s35, 1
      %p79 = por %p77, %p78
      %p80 = scmp.ne.s32.totalorder %s69, %s70
      %p81 = scmp.eq.s32.totalorder %s35, 0
      %p82 = por %p80, %p81
      %p83 = scmp.ne.s32.totalorder %s69, %s70
      %p84 = scmp.eq.s32.totalorder %s36, 1
      %p85 = por %p83, %p84
      %p87 = scmp.ne.s32.totalorder %s70, %s86
      %p88 = scmp.eq.s32.totalorder %s36, 0
      %p89 = por %p87, %p88
      %s91 = sadd.s32 %s90, 1
      %p94 = scmp.eq.s32.totalorder %s30, 1
      %p95 = scmp.ne.s32.totalorder %s90, %s92
      %p96 = scmp.eq.s32.totalorder %s30, 0
      %p97 = por %p95, %p96
      %p98 = scmp.ne.s32.totalorder %s90, %s92
      %p99 = scmp.eq.s32.totalorder %s35, 1
      %p100 = por %p98, %p99
      %p101 = scmp.ne.s32.totalorder %s92, %s93
      %p102 = scmp.eq.s32.totalorder %s35, 0
      %p103 = por %p101, %p102
      %p104 = scmp.ne.s32.totalorder %s92, %s93
      %p105 = scmp.eq.s32.totalorder %s36, 1
      %p106 = por %p104, %p105
      %p108 = scmp.ne.s32.totalorder %s93, %s107
      %p109 = scmp.eq.s32.totalorder %s36, 0
      %p110 = por %p108, %p109
      %s112 = sadd.s32 %s111, 1
      %p115 = scmp.eq.s32.totalorder %s30, 1
      %p116 = scmp.ne.s32.totalorder %s111, %s113
      %p117 = scmp.eq.s32.totalorder %s30, 0
      %p118 = por %p116, %p117
      %p119 = scmp.ne.s32.totalorder %s111, %s113
      %p120 = scmp.eq.s32.totalorder %s35, 1
      %p121 = por %p119, %p120
      %p122 = scmp.ne.s32.totalorder %s113, %s114
      %p123 = scmp.eq.s32.totalorder %s35, 0
      %p124 = por %p122, %p123
      %p125 = scmp.ne.s32.totalorder %s113, %s114
      %p126 = scmp.eq.s32.totalorder %s36, 1
      %p127 = por %p125, %p126
      %p129 = scmp.ne.s32.totalorder %s114, %s128
      %p130 = scmp.eq.s32.totalorder %s36, 0
      %p131 = por %p129, %p130
      %s133 = sadd.s32 %s132, 1
      %p136 = scmp.eq.s32.totalorder %s30, 1
      %p137 = scmp.ne.s32.totalorder %s132, %s134
      %p138 = scmp.eq.s32.totalorder %s30, 0
      %p139 = por %p137, %p138
      %p140 = scmp.ne.s32.totalorder %s132, %s134
      %p141 = scmp.eq.s32.totalorder %s35, 1
      %p142 = por %p140, %p141
      %p143 = scmp.ne.s32.totalorder %s134, %s135
      %p144 = scmp.eq.s32.totalorder %s35, 0
      %p145 = por %p143, %p144
      %p146 = scmp.ne.s32.totalorder %s134, %s135
      %p147 = scmp.eq.s32.totalorder %s36, 1
      %p148 = por %p146, %p147
      %p150 = scmp.ne.s32.totalorder %s135, %s149
      %p151 = scmp.eq.s32.totalorder %s36, 0
      %p152 = por %p150, %p151
      %s154 = sadd.s32 %s153, 1
      %p157 = scmp.eq.s32.totalorder %s30, 1
      %p158 = scmp.ne.s32.totalorder %s153, %s155
      %p159 = scmp.eq.s32.totalorder %s30, 0
      %p160 = por %p158, %p159
      %p161 = scmp.ne.s32.totalorder %s153, %s155
      %p162 = scmp.eq.s32.totalorder %s35, 1
      %p163 = por %p161, %p162
      %p164 = scmp.ne.s32.totalorder %s155, %s156
      %p165 = scmp.eq.s32.totalorder %s35, 0
      %p166 = por %p164, %p165
      %p167 = scmp.ne.s32.totalorder %s155, %s156
      %p168 = scmp.eq.s32.totalorder %s36, 1
      %p169 = por %p167, %p168
      %p171 = scmp.ne.s32.totalorder %s156, %s170
      %p172 = scmp.eq.s32.totalorder %s36, 0
      %p173 = por %p171, %p172
      %s175 = sadd.s32 %s174, 1
      %p178 = scmp.eq.s32.totalorder %s30, 1
      %p179 = scmp.ne.s32.totalorder %s174, %s176
      %p180 = scmp.eq.s32.totalorder %s30, 0
      %p181 = por %p179, %p180
      %p182 = scmp.ne.s32.totalorder %s174, %s176
      %p183 = scmp.eq.s32.totalorder %s35, 1
      %p184 = por %p182, %p183
      %p185 = scmp.ne.s32.totalorder %s176, %s177
      %p186 = scmp.eq.s32.totalorder %s35, 0
      %p187 = por %p185, %p186
      %p188 = scmp.ne.s32.totalorder %s176, %s177
      %p189 = scmp.eq.s32.totalorder %s36, 1
      %p190 = por %p188, %p189
      %p192 = scmp.ne.s32.totalorder %s177, %s191
      %p193 = scmp.eq.s32.totalorder %s36, 0
      %p194 = por %p192, %p193
      %s196 = sadd.s32 %s195, 1
      %p199 = scmp.eq.s32.totalorder %s30, 1
      %p200 = scmp.ne.s32.totalorder %s195, %s197
      %p201 = scmp.eq.s32.totalorder %s30, 0
      %p202 = por %p200, %p201
      %p203 = scmp.ne.s32.totalorder %s195, %s197
      %p204 = scmp.eq.s32.totalorder %s35, 1
      %p205 = por %p203, %p204
      %p206 = scmp.ne.s32.totalorder %s197, %s198
      %p207 = scmp.eq.s32.totalorder %s35, 0
      %p208 = por %p206, %p207
      %p209 = scmp.ne.s32.totalorder %s197, %s198
      %p210 = scmp.eq.s32.totalorder %s36, 1
      %p211 = por %p209, %p210
      %p213 = scmp.ne.s32.totalorder %s198, %s212
      %p214 = scmp.eq.s32.totalorder %s36, 0
      %p215 = por %p213, %p214
      %s216 = ssub.s32 %s30, %s37
      %p217 = scmp.eq.s32.totalorder %s216, 0
      %s219 = sadd.s32 %s218, 1
      %s220 = scalar_select %p217, %s218, %s219
      %p223 = pneg %p217
      %p224 = scmp.eq.s32.totalorder %s30, 1
      %p225 = por %p223, %p224
      %p226 = scmp.ne.s32.totalorder %s218, %s221
      %p227 = scmp.eq.s32.totalorder %s30, 0
      %p228 = por %p226, %p227
      %p229 = scmp.ne.s32.totalorder %s218, %s221
      %p230 = scmp.eq.s32.totalorder %s35, 1
      %p231 = por %p229, %p230
      %p232 = scmp.ne.s32.totalorder %s221, %s222
      %p233 = scmp.eq.s32.totalorder %s35, 0
      %p234 = por %p232, %p233
      %p235 = scmp.ne.s32.totalorder %s221, %s222
      %p236 = scmp.eq.s32.totalorder %s36, 1
      %p237 = por %p235, %p236
      %p239 = scmp.ne.s32.totalorder %s222, %s238
      %p240 = scmp.eq.s32.totalorder %s36, 0
      %p241 = por %p239, %p240
      %s242 = ssub.s32 %s30, %s37
      %p243 = scmp.eq.s32.totalorder %s242, 0
      %s245 = sadd.s32 %s244, 1
      %s246 = scalar_select %p243, %s244, %s245
      %p249 = pneg %p243
      %p250 = scmp.eq.s32.totalorder %s30, 1
      %p251 = por %p249, %p250
      %p252 = scmp.ne.s32.totalorder %s244, %s247
      %p253 = scmp.eq.s32.totalorder %s30, 0
      %p254 = por %p252, %p253
      %p255 = scmp.ne.s32.totalorder %s244, %s247
      %p256 = scmp.eq.s32.totalorder %s35, 1
      %p257 = por %p255, %p256
      %p258 = scmp.ne.s32.totalorder %s247, %s248
      %p259 = scmp.eq.s32.totalorder %s35, 0
      %p260 = por %p258, %p259
      %p261 = scmp.ne.s32.totalorder %s247, %s248
      %p262 = scmp.eq.s32.totalorder %s36, 1
      %p263 = por %p261, %p262
      %p265 = scmp.ne.s32.totalorder %s248, %s264
      %p266 = scmp.eq.s32.totalorder %s36, 0
      %p267 = por %p265, %p266
      %p268 = scmp.le.s32.totalorder 1, %s30
      %p269 = scmp.lt.s32.totalorder %s30, 3
      %p270 = pnand %p268, %p269
      %p271 = pneg %p270
      // Predicated region
      $region9: #{tpu_custom_call.1} parent=5 // pred_check
        _
      $region10: #{tpu_custom_call.1} parent=5 // pred_check_branch
        %273 = sbr.rel (%p270) target = $region12
      $region11: #{tpu_custom_call.1} parent=5 // pred_region
        %s274 = ssub.s32 %s30, 1
        // Predicated region
        $region13: #{tpu_custom_call.1} parent=11 // pred_check
          %p275 = pneg %p103
        $region14: #{tpu_custom_call.1} parent=11 // pred_check_branch
          %277 = sbr.rel (%p275) target = $region16
        $region15: #{tpu_custom_call.1} parent=11 // pred_region
          %s279 = ssub.s32 4096, 4096
          %280 = vsyncadd [#allocation6], %s279
          %s281 = sshll.u32 [#allocation7], 4
          %s282 = int_to_ptr.vmem [resolvable:$true] %s281
          %287 = dma.hbm_to_vmem [thread:$0]  %s2, 4096, %s282, [#allocation6], 256, 256, 16
        $region16: #{tpu_custom_call.1} parent=11 // pred_fallthru
          _
        // Predicated region
        $region17: #{tpu_custom_call.1} parent=11 // pred_check
          %p288 = pneg %p124
        $region18: #{tpu_custom_call.1} parent=11 // pred_check_branch
          %290 = sbr.rel (%p288) target = $region20
        $region19: #{tpu_custom_call.1} parent=11 // pred_region
          %s292 = ssub.s32 2048, 2048
          %293 = vsyncadd [#allocation9], %s292
          %s294 = sshll.u32 [#allocation8], 4
          %s295 = int_to_ptr.vmem [resolvable:$true] %s294
          %300 = dma.hbm_to_vmem [thread:$0]  %s3, 2048, %s295, [#allocation9], 128, 128, 8
        $region20: #{tpu_custom_call.1} parent=11 // pred_fallthru
          _
        // Predicated region
        $region21: #{tpu_custom_call.1} parent=11 // pred_check
          %p301 = pneg %p145
        $region22: #{tpu_custom_call.1} parent=11 // pred_check_branch
          %303 = sbr.rel (%p301) target = $region24
        $region23: #{tpu_custom_call.1} parent=11 // pred_region
          %s305 = ssub.s32 2048, 2048
          %306 = vsyncadd [#allocation9], %s305
          %s307 = sshll.u32 [#allocation10], 4
          %s308 = int_to_ptr.vmem [resolvable:$true] %s307
          %313 = dma.hbm_to_vmem [thread:$0]  %s4, 2048, %s308, [#allocation9], 128, 128, 8
        $region24: #{tpu_custom_call.1} parent=11 // pred_fallthru
          _
        // Predicated region
        $region25: #{tpu_custom_call.1} parent=11 // pred_check
          %p314 = pneg %p166
        $region26: #{tpu_custom_call.1} parent=11 // pred_check_branch
          %316 = sbr.rel (%p314) target = $region28
        $region27: #{tpu_custom_call.1} parent=11 // pred_region
          _
        $region28: #{tpu_custom_call.1} parent=11 // pred_fallthru
          _
        // Predicated region
        $region29: #{tpu_custom_call.1} parent=11 // pred_check
          %p317 = pneg %p187
        $region30: #{tpu_custom_call.1} parent=11 // pred_check_branch
          %319 = sbr.rel (%p317) target = $region32
        $region31: #{tpu_custom_call.1} parent=11 // pred_region
          %s321 = ssub.s32 4096, 4096
          %322 = vsyncadd [#allocation12], %s321
          %s323 = sshll.u32 [#allocation11], 4
          %s324 = int_to_ptr.vmem [resolvable:$true] %s323
          %329 = dma.hbm_to_vmem [thread:$0]  %s6, 4096, %s324, [#allocation12], 256, 256, 16
        $region32: #{tpu_custom_call.1} parent=11 // pred_fallthru
          _
        // Predicated region
        $region33: #{tpu_custom_call.1} parent=11 // pred_check
          %p330 = pneg %p208
        $region34: #{tpu_custom_call.1} parent=11 // pred_check_branch
          %332 = sbr.rel (%p330) target = $region36
        $region35: #{tpu_custom_call.1} parent=11 // pred_region
          _
        $region36: #{tpu_custom_call.1} parent=11 // pred_fallthru
          _
      $region12: #{tpu_custom_call.1} parent=5 // pred_fallthru
        _
      %p333 = scmp.lt.s32.totalorder %s30, 2
      // Predicated region
      $region37: #{tpu_custom_call.1} parent=5 // pred_check
        %p334 = pneg %p333
      $region38: #{tpu_custom_call.1} parent=5 // pred_check_branch
        %336 = sbr.rel (%p334) target = $region40
      $region39: #{tpu_custom_call.1} parent=5 // pred_region
        // Predicated region
        $region41: #{tpu_custom_call.1} parent=39 // pred_check
          %p337 = pneg %p50
        $region42: #{tpu_custom_call.1} parent=39 // pred_check_branch
          %339 = sbr.rel (%p337) target = $region44
        $region43: #{tpu_custom_call.1} parent=39 // pred_region
          %s340 = sand.u32 %s40, 1
          %s341 = scalar_lea.sflag [#allocation3], %s340
          %s342 = sand.u32 %s40, 1
          %s343 = smul.addr %s342, 8
          %s344 = scalar_lea.vmem [#allocation2], %s343
          %s346 = ssub.s32 128, 128
          %347 = vsyncadd %s341, %s346
          %s348 = smul.addr %s30, 128
          %s349 = scalar_lea.hbm %s0, %s348
          %s351 = sshll.u32 %s344, 4
          %s352 = int_to_ptr.vmem [resolvable:$true] %s351
          %354 = dma.hbm_to_vmem [thread:$0]  %s349, 128, %s352, %s341
        $region44: #{tpu_custom_call.1} parent=39 // pred_fallthru
          _
        // Predicated region
        $region45: #{tpu_custom_call.1} parent=39 // pred_check
          %p355 = pneg %p76
        $region46: #{tpu_custom_call.1} parent=39 // pred_check_branch
          %357 = sbr.rel (%p355) target = $region48
        $region47: #{tpu_custom_call.1} parent=39 // pred_region
          %s358 = sand.u32 %s30, 1
          %s359 = scalar_lea.sflag [#allocation6], %s358
          %s360 = sand.u32 %s66, 1
          %s361 = smul.addr %s360, 24
          %s362 = scalar_lea.vmem [#allocation5], %s361
          %s364 = ssub.s32 384, 384
          %365 = vsyncadd %s359, %s364
          %s366 = smul.addr %s30, 128
          %s367 = scalar_lea.hbm %s1, %s366
          %s368 = sshll.u32 %s362, 4
          %s369 = int_to_ptr.vmem [resolvable:$true] %s368
          %374 = dma.hbm_to_vmem [thread:$0]  %s367, 384, %s369, %s359, 256, 128, 8
        $region48: #{tpu_custom_call.1} parent=39 // pred_fallthru
          _
      $region40: #{tpu_custom_call.1} parent=5 // pred_fallthru
        _
      %p375 = scmp.le.s32.totalorder 1, %s30
      %p376 = scmp.lt.s32.totalorder %s30, 3
      %p377 = pnand %p375, %p376
      %p378 = pneg %p377
      // Predicated region
      $region49: #{tpu_custom_call.1} parent=5 // pred_check
        _
      $region50: #{tpu_custom_call.1} parent=5 // pred_check_branch
        %380 = sbr.rel (%p377) target = $region52
      $region51: #{tpu_custom_call.1} parent=5 // pred_region
        %s381 = ssub.s32 %s30, 1
        %s382 = sand.u32 %s43, 1
        %s383 = scalar_lea.sflag [#allocation3], %s382
        %s384 = sand.u32 %s43, 1
        %s385 = smul.addr %s384, 8
        %s386 = scalar_lea.vmem [#allocation2], %s385
        // Predicated region
        $region53: #{tpu_custom_call.1} parent=51 // pred_check
          %p387 = pneg %p56
        $region54: #{tpu_custom_call.1} parent=51 // pred_check_branch
          %389 = sbr.rel (%p387) target = $region56
        $region55: #{tpu_custom_call.1} parent=51 // pred_region
          %390 = dma.done %s383, 128
        $region56: #{tpu_custom_call.1} parent=51 // pred_fallthru
          _
        %s391 = sand.u32 %s35, 1
        %s392 = scalar_lea.sflag [#allocation6], %s391
        %s393 = sand.u32 %s69, 1
        %s394 = smul.addr %s393, 24
        %s395 = scalar_lea.vmem [#allocation5], %s394
        // Predicated region
        $region57: #{tpu_custom_call.1} parent=51 // pred_check
          %p396 = pneg %p82
        $region58: #{tpu_custom_call.1} parent=51 // pred_check_branch
          %398 = sbr.rel (%p396) target = $region60
        $region59: #{tpu_custom_call.1} parent=51 // pred_region
          %399 = dma.done %s392, 384
        $region60: #{tpu_custom_call.1} parent=51 // pred_fallthru
          _
        // Predicated region
        $region61: #{tpu_custom_call.1} parent=51 // pred_check
          %p400 = pneg %p103
        $region62: #{tpu_custom_call.1} parent=51 // pred_check_branch
          %402 = sbr.rel (%p400) target = $region64
        $region63: #{tpu_custom_call.1} parent=51 // pred_region
          %403 = dma.done [#allocation6], 4096
        $region64: #{tpu_custom_call.1} parent=51 // pred_fallthru
          _
        // Predicated region
        $region65: #{tpu_custom_call.1} parent=51 // pred_check
          %p404 = pneg %p124
        $region66: #{tpu_custom_call.1} parent=51 // pred_check_branch
          %406 = sbr.rel (%p404) target = $region68
        $region67: #{tpu_custom_call.1} parent=51 // pred_region
          %407 = dma.done [#allocation9], 2048
        $region68: #{tpu_custom_call.1} parent=51 // pred_fallthru
          _
        // Predicated region
        $region69: #{tpu_custom_call.1} parent=51 // pred_check
          %p408 = pneg %p145
        $region70: #{tpu_custom_call.1} parent=51 // pred_check_branch
          %410 = sbr.rel (%p408) target = $region72
        $region71: #{tpu_custom_call.1} parent=51 // pred_region
          %411 = dma.done [#allocation9], 2048
        $region72: #{tpu_custom_call.1} parent=51 // pred_fallthru
          _
        // Predicated region
        $region73: #{tpu_custom_call.1} parent=51 // pred_check
          %p412 = pneg %p187
        $region74: #{tpu_custom_call.1} parent=51 // pred_check_branch
          %414 = sbr.rel (%p412) target = $region76
        $region75: #{tpu_custom_call.1} parent=51 // pred_region
          %415 = dma.done [#allocation12], 4096
        $region76: #{tpu_custom_call.1} parent=51 // pred_fallthru
          _
        %s416 = sand.u32 %s43, 1
        %s417 = scalar_lea.sflag [#allocation3], %s416
        %s418 = sand.u32 %s43, 1
        %s419 = smul.addr %s418, 8
        %s420 = scalar_lea.vmem [#allocation2], %s419
        %p421 = pneg %p56
        %p422 = pneg %p53
        %s423 = sand.u32 %s35, 1
        %s424 = scalar_lea.sflag [#allocation6], %s423
        %s425 = sand.u32 %s69, 1
        %s426 = smul.addr %s425, 24
        %s427 = scalar_lea.vmem [#allocation5], %s426
        %p428 = pneg %p82
        %p429 = pneg %p79
        %p430 = pneg %p103
        %p431 = pneg %p100
        %p432 = pneg %p124
        %p433 = pneg %p121
        %p434 = pneg %p145
        %p435 = pneg %p142
        %p436 = pneg %p166
        %p437 = pneg %p163
        %p438 = pneg %p187
        %p439 = pneg %p184
        %p440 = pneg %p208
        %p441 = pneg %p205
        %p442 = pneg %p234
        %p443 = pneg %p231
        %s444 = sand.u32 %s221, 1
        %s445 = scalar_lea.sflag [#allocation4], %s444
        %s446 = sand.u32 %s221, 1
        %s447 = smul.addr %s446, 8
        %s448 = scalar_lea.vmem [#allocation13], %s447
        %p449 = pneg %p260
        %p450 = pneg %p257
        %s451 = sand.u32 %s247, 1
        %s452 = scalar_lea.sflag [#allocation15], %s451
        %s453 = sand.u32 %s247, 1
        %s454 = smul.addr %s453, 24
        %s455 = scalar_lea.vmem [#allocation14], %s454
        %v456 = vld [vmem:[%s395] sm:$0xff]
        %v457 = vld [vmem:[%s395 + $0x8] sm:$0xff]
        %v458 = vld [vmem:[%s395 + $0x10] sm:$0xff]
        %v459 = vld [vmem:[#allocation7] sm:$0xff]
        %v460 = vld [vmem:[#allocation7 + $0x8] sm:$0xff]
        %v461 = vld [vmem:[#allocation7 + $0x10] sm:$0xff]
        %v462 = vld [vmem:[#allocation7 + $0x18] sm:$0xff]
        %v463 = vld [vmem:[#allocation7 + $0x20] sm:$0xff]
        %v464 = vld [vmem:[#allocation7 + $0x28] sm:$0xff]
        %v465 = vld [vmem:[#allocation7 + $0x30] sm:$0xff]
        %v466 = vld [vmem:[#allocation7 + $0x38] sm:$0xff]
        %v467 = vld [vmem:[#allocation7 + $0x40] sm:$0xff]
        %v468 = vld [vmem:[#allocation7 + $0x48] sm:$0xff]
        %v469 = vld [vmem:[#allocation7 + $0x50] sm:$0xff]
        %v470 = vld [vmem:[#allocation7 + $0x58] sm:$0xff]
        %v471 = vld [vmem:[#allocation7 + $0x60] sm:$0xff]
        %v472 = vld [vmem:[#allocation7 + $0x68] sm:$0xff]
        %v473 = vld [vmem:[#allocation7 + $0x70] sm:$0xff]
        %v474 = vld [vmem:[#allocation7 + $0x78] sm:$0xff]
        %v475 = vld [vmem:[#allocation7 + $0x80] sm:$0xff]
        %v476 = vld [vmem:[#allocation7 + $0x88] sm:$0xff]
        %v477 = vld [vmem:[#allocation7 + $0x90] sm:$0xff]
        %v478 = vld [vmem:[#allocation7 + $0x98] sm:$0xff]
        %v479 = vld [vmem:[#allocation7 + $0xa0] sm:$0xff]
        %v480 = vld [vmem:[#allocation7 + $0xa8] sm:$0xff]
        %v481 = vld [vmem:[#allocation7 + $0xb0] sm:$0xff]
        %v482 = vld [vmem:[#allocation7 + $0xb8] sm:$0xff]
        %v483 = vld [vmem:[#allocation7 + $0xc0] sm:$0xff]
        %v484 = vld [vmem:[#allocation7 + $0xc8] sm:$0xff]
        %v485 = vld [vmem:[#allocation7 + $0xd0] sm:$0xff]
        %v486 = vld [vmem:[#allocation7 + $0xd8] sm:$0xff]
        %v487 = vld [vmem:[#allocation7 + $0xe0] sm:$0xff]
        %v488 = vld [vmem:[#allocation7 + $0xe8] sm:$0xff]
        %v489 = vld [vmem:[#allocation7 + $0xf0] sm:$0xff]
        %v490 = vld [vmem:[#allocation7 + $0xf8] sm:$0xff]
        %491 = vmatprep.subr.mxu0 %v490
        %492 = vmatpush1.msra.mxu0 %v489
        %493 = vmatprep.subr.mxu0 %v488
        %494 = vmatpush1.msra.mxu0 %v487
        %495 = vmatprep.subr.mxu0 %v486
        %496 = vmatpush1.msra.mxu0 %v485
        %497 = vmatprep.subr.mxu0 %v484
        %498 = vmatpush1.msra.mxu0 %v483
        %499 = vmatprep.subr.mxu0 %v482
        %500 = vmatpush1.msra.mxu0 %v481
        %501 = vmatprep.subr.mxu0 %v480
        %502 = vmatpush1.msra.mxu0 %v479
        %503 = vmatprep.subr.mxu0 %v478
        %504 = vmatpush1.msra.mxu0 %v477
        %505 = vmatprep.subr.mxu0 %v476
        %506 = vmatpush1.msra.mxu0 %v475
        %507 = vmatprep.subr.mxu0 %v474
        %508 = vmatpush1.msra.mxu0 %v473
        %509 = vmatprep.subr.mxu0 %v472
        %510 = vmatpush1.msra.mxu0 %v471
        %511 = vmatprep.subr.mxu0 %v470
        %512 = vmatpush1.msra.mxu0 %v469
        %513 = vmatprep.subr.mxu0 %v468
        %514 = vmatpush1.msra.mxu0 %v467
        %515 = vmatprep.subr.mxu0 %v466
        %516 = vmatpush1.msra.mxu0 %v465
        %517 = vmatprep.subr.mxu0 %v464
        %518 = vmatpush1.msra.mxu0 %v463
        %519 = vmatprep.subr.mxu0 %v462
        %520 = vmatpush1.msra.mxu0 %v461
        %521 = vmatprep.subr.mxu0 %v460
        %522 = vmatpush1.msra.mxu0 %v459
        %523 = vmatprep.subr.mxu0 0.0
        %524 = vmatpush2.msra.mxu0 0.0
        %525 = vmatprep.subr.mxu0 0.0
        %526 = vmatpush2.msra.mxu0 0.0
        %527 = vmatprep.subr.mxu0 0.0
        %528 = vmatpush2.msra.mxu0 0.0
        %529 = vmatprep.subr.mxu0 0.0
        %530 = vmatpush2.msra.mxu0 0.0
        %531 = vmatprep.subr.mxu0 0.0
        %532 = vmatpush2.msra.mxu0 0.0
        %533 = vmatprep.subr.mxu0 0.0
        %534 = vmatpush2.msra.mxu0 0.0
        %535 = vmatprep.subr.mxu0 0.0
        %536 = vmatpush2.msra.mxu0 0.0
        %537 = vmatprep.subr.mxu0 0.0
        %538 = vmatpush2.msra.mxu0 0.0
        %539 = vmatprep.subr.mxu0 0.0
        %540 = vmatpush2.msra.mxu0 0.0
        %541 = vmatprep.subr.mxu0 0.0
        %542 = vmatpush2.msra.mxu0 0.0
        %543 = vmatprep.subr.mxu0 0.0
        %544 = vmatpush2.msra.mxu0 0.0
        %545 = vmatprep.subr.mxu0 0.0
        %546 = vmatpush2.msra.mxu0 0.0
        %547 = vmatprep.subr.mxu0 0.0
        %548 = vmatpush2.msra.mxu0 0.0
        %549 = vmatprep.subr.mxu0 0.0
        %550 = vmatpush2.msra.mxu0 0.0
        %551 = vmatprep.subr.mxu0 0.0
        %552 = vmatpush2.msra.mxu0 0.0
        %553 = vmatprep.subr.mxu0 0.0
        %554 = vmatpush2.msra.mxu0 0.0
        %555 = vmatprep.mubr.f32.mxu0 0.0
        %556 = vmatmul.mubr.f32.gmra.mxu0 %v456
        %v557 = vpop.f32.mrf.mxu0
        %v558 = vadd.f32 0.0, %v557
        %v559 = vpop.f32.mrf.mxu0
        %v560 = vadd.f32 0.0, %v559
        %561 = vmatprep.mubr.f32.mxu0 0.0
        %562 = vmatmul.mubr.f32.gmra.mxu0 %v457
        %v563 = vpop.f32.mrf.mxu0
        %v564 = vadd.f32 0.0, %v563
        %v565 = vpop.f32.mrf.mxu0
        %v566 = vadd.f32 0.0, %v565
        %567 = vmatprep.mubr.f32.mxu0 0.0
        %568 = vmatmul.mubr.f32.gmra.mxu0 %v458
        %v569 = vpop.f32.mrf.mxu0
        %v570 = vadd.f32 0.0, %v569
        %v571 = vpop.f32.mrf.mxu0
        %v572 = vadd.f32 0.0, %v571
        %573 = vdwg.mxu0
        %v574 = vmul.f32 %v558, %v558
        %v575 = vmul.f32 %v564, %v564
        %v576 = vmul.f32 %v570, %v570
        %v577 = vadd.f32 %v574, %v575
        %v578 = vadd.f32 %v577, %v576
        %v579 = vrsqrt.pop %v578
        %v580 = vmul.f32 %v578, %v579
        %vm581 = vcmp.eq.f32.partialorder %v578, inf
        %v582 = vsel %vm581, %v578, %v580
        %vm583 = vcmp.eq.f32.partialorder %v578, 0.0
        %v584 = vand.u32 %v578, 2147483648
        %v585 = vsel %vm583, %v584, %v582
        %v586 = vld [vmem:[%s386] sm:$0xff]
        %v587 = vld [vmem:[#allocation8] sm:$0xff]
        %v588 = vld [vmem:[#allocation8 + $0x8] sm:$0xff]
        %v589 = vld [vmem:[#allocation8 + $0x10] sm:$0xff]
        %v590 = vld [vmem:[#allocation8 + $0x18] sm:$0xff]
        %v591 = vld [vmem:[#allocation8 + $0x20] sm:$0xff]
        %v592 = vld [vmem:[#allocation8 + $0x28] sm:$0xff]
        %v593 = vld [vmem:[#allocation8 + $0x30] sm:$0xff]
        %v594 = vld [vmem:[#allocation8 + $0x38] sm:$0xff]
        %v595 = vld [vmem:[#allocation8 + $0x40] sm:$0xff]
        %v596 = vld [vmem:[#allocation8 + $0x48] sm:$0xff]
        %v597 = vld [vmem:[#allocation8 + $0x50] sm:$0xff]
        %v598 = vld [vmem:[#allocation8 + $0x58] sm:$0xff]
        %v599 = vld [vmem:[#allocation8 + $0x60] sm:$0xff]
        %v600 = vld [vmem:[#allocation8 + $0x68] sm:$0xff]
        %v601 = vld [vmem:[#allocation8 + $0x70] sm:$0xff]
        %v602 = vld [vmem:[#allocation8 + $0x78] sm:$0xff]
        %v603 = vld [vmem:[#allocation10] sm:$0xff]
        %v604 = vld [vmem:[#allocation10 + $0x8] sm:$0xff]
        %v605 = vld [vmem:[#allocation10 + $0x10] sm:$0xff]
        %v606 = vld [vmem:[#allocation10 + $0x18] sm:$0xff]
        %v607 = vld [vmem:[#allocation10 + $0x20] sm:$0xff]
        %v608 = vld [vmem:[#allocation10 + $0x28] sm:$0xff]
        %v609 = vld [vmem:[#allocation10 + $0x30] sm:$0xff]
        %v610 = vld [vmem:[#allocation10 + $0x38] sm:$0xff]
        %v611 = vld [vmem:[#allocation10 + $0x40] sm:$0xff]
        %v612 = vld [vmem:[#allocation10 + $0x48] sm:$0xff]
        %v613 = vld [vmem:[#allocation10 + $0x50] sm:$0xff]
        %v614 = vld [vmem:[#allocation10 + $0x58] sm:$0xff]
        %v615 = vld [vmem:[#allocation10 + $0x60] sm:$0xff]
        %v616 = vld [vmem:[#allocation10 + $0x68] sm:$0xff]
        %v617 = vld [vmem:[#allocation10 + $0x70] sm:$0xff]
        %v618 = vld [vmem:[#allocation10 + $0x78] sm:$0xff]
        %619 = vmatprep.subr.mxu0 0.0
        %620 = vmatpush1.msra.mxu0 %v618
        %621 = vmatprep.subr.mxu0 0.0
        %622 = vmatpush1.msra.mxu0 %v617
        %623 = vmatprep.subr.mxu0 0.0
        %624 = vmatpush1.msra.mxu0 %v616
        %625 = vmatprep.subr.mxu0 0.0
        %626 = vmatpush1.msra.mxu0 %v615
        %627 = vmatprep.subr.mxu0 0.0
        %628 = vmatpush1.msra.mxu0 %v614
        %629 = vmatprep.subr.mxu0 0.0
        %630 = vmatpush1.msra.mxu0 %v613
        %631 = vmatprep.subr.mxu0 0.0
        %632 = vmatpush1.msra.mxu0 %v612
        %633 = vmatprep.subr.mxu0 0.0
        %634 = vmatpush1.msra.mxu0 %v611
        %635 = vmatprep.subr.mxu0 0.0
        %636 = vmatpush1.msra.mxu0 %v610
        %637 = vmatprep.subr.mxu0 0.0
        %638 = vmatpush1.msra.mxu0 %v609
        %639 = vmatprep.subr.mxu0 0.0
        %640 = vmatpush1.msra.mxu0 %v608
        %641 = vmatprep.subr.mxu0 0.0
        %642 = vmatpush1.msra.mxu0 %v607
        %643 = vmatprep.subr.mxu0 0.0
        %644 = vmatpush1.msra.mxu0 %v606
        %645 = vmatprep.subr.mxu0 0.0
        %646 = vmatpush1.msra.mxu0 %v605
        %647 = vmatprep.subr.mxu0 0.0
        %648 = vmatpush1.msra.mxu0 %v604
        %649 = vmatprep.subr.mxu0 0.0
        %650 = vmatpush1.msra.mxu0 %v603
        %651 = vmatprep.subr.mxu0 0.0
        %652 = vmatpush2.msra.mxu0 0.0
        %653 = vmatprep.subr.mxu0 0.0
        %654 = vmatpush2.msra.mxu0 0.0
        %655 = vmatprep.subr.mxu0 0.0
        %656 = vmatpush2.msra.mxu0 0.0
        %657 = vmatprep.subr.mxu0 0.0
        %658 = vmatpush2.msra.mxu0 0.0
        %659 = vmatprep.subr.mxu0 0.0
        %660 = vmatpush2.msra.mxu0 0.0
        %661 = vmatprep.subr.mxu0 0.0
        %662 = vmatpush2.msra.mxu0 0.0
        %663 = vmatprep.subr.mxu0 0.0
        %664 = vmatpush2.msra.mxu0 0.0
        %665 = vmatprep.subr.mxu0 0.0
        %666 = vmatpush2.msra.mxu0 0.0
        %667 = vmatprep.subr.mxu0 0.0
        %668 = vmatpush2.msra.mxu0 0.0
        %669 = vmatprep.subr.mxu0 0.0
        %670 = vmatpush2.msra.mxu0 0.0
        %671 = vmatprep.subr.mxu0 0.0
        %672 = vmatpush2.msra.mxu0 0.0
        %673 = vmatprep.subr.mxu0 0.0
        %674 = vmatpush2.msra.mxu0 0.0
        %675 = vmatprep.subr.mxu0 0.0
        %676 = vmatpush2.msra.mxu0 0.0
        %677 = vmatprep.subr.mxu0 0.0
        %678 = vmatpush2.msra.mxu0 0.0
        %679 = vmatprep.subr.mxu0 0.0
        %680 = vmatpush2.msra.mxu0 0.0
        %681 = vmatprep.subr.mxu0 0.0
        %682 = vmatpush2.msra.mxu0 0.0
        %683 = vmatprep.mubr.f32.mxu0 0.0
        %684 = vmatmul.mubr.f32.gmra.mxu0 %v585
        %v685 = vpop.f32.mrf.mxu0
        %v686 = vadd.f32 0.0, %v685
        %v687 = vpop.f32.mrf.mxu0
        %688 = vdwg.mxu0
        %689 = vmatprep.subr.mxu0 0.0
        %690 = vmatpush1.msra.mxu0 %v602
        %691 = vmatprep.subr.mxu0 0.0
        %692 = vmatpush1.msra.mxu0 %v601
        %693 = vmatprep.subr.mxu0 0.0
        %694 = vmatpush1.msra.mxu0 %v600
        %695 = vmatprep.subr.mxu0 0.0
        %696 = vmatpush1.msra.mxu0 %v599
        %697 = vmatprep.subr.mxu0 0.0
        %698 = vmatpush1.msra.mxu0 %v598
        %699 = vmatprep.subr.mxu0 0.0
        %700 = vmatpush1.msra.mxu0 %v597
        %701 = vmatprep.subr.mxu0 0.0
        %702 = vmatpush1.msra.mxu0 %v596
        %703 = vmatprep.subr.mxu0 0.0
        %704 = vmatpush1.msra.mxu0 %v595
        %705 = vmatprep.subr.mxu0 0.0
        %706 = vmatpush1.msra.mxu0 %v594
        %707 = vmatprep.subr.mxu0 0.0
        %708 = vmatpush1.msra.mxu0 %v593
        %709 = vmatprep.subr.mxu0 0.0
        %710 = vmatpush1.msra.mxu0 %v592
        %711 = vmatprep.subr.mxu0 0.0
        %712 = vmatpush1.msra.mxu0 %v591
        %713 = vmatprep.subr.mxu0 0.0
        %714 = vmatpush1.msra.mxu0 %v590
        %715 = vmatprep.subr.mxu0 0.0
        %716 = vmatpush1.msra.mxu0 %v589
        %717 = vmatprep.subr.mxu0 0.0
        %718 = vmatpush1.msra.mxu0 %v588
        %719 = vmatprep.subr.mxu0 0.0
        %720 = vmatpush1.msra.mxu0 %v587
        %721 = vmatprep.subr.mxu0 0.0
        %722 = vmatpush2.msra.mxu0 0.0
        %723 = vmatprep.subr.mxu0 0.0
        %724 = vmatpush2.msra.mxu0 0.0
        %725 = vmatprep.subr.mxu0 0.0
        %726 = vmatpush2.msra.mxu0 0.0
        %727 = vmatprep.subr.mxu0 0.0
        %728 = vmatpush2.msra.mxu0 0.0
        %729 = vmatprep.subr.mxu0 0.0
        %730 = vmatpush2.msra.mxu0 0.0
        %731 = vmatprep.subr.mxu0 0.0
        %732 = vmatpush2.msra.mxu0 0.0
        %733 = vmatprep.subr.mxu0 0.0
        %734 = vmatpush2.msra.mxu0 0.0
        %735 = vmatprep.subr.mxu0 0.0
        %736 = vmatpush2.msra.mxu0 0.0
        %737 = vmatprep.subr.mxu0 0.0
        %738 = vmatpush2.msra.mxu0 0.0
        %739 = vmatprep.subr.mxu0 0.0
        %740 = vmatpush2.msra.mxu0 0.0
        %741 = vmatprep.subr.mxu0 0.0
        %742 = vmatpush2.msra.mxu0 0.0
        %743 = vmatprep.subr.mxu0 0.0
        %744 = vmatpush2.msra.mxu0 0.0
        %745 = vmatprep.subr.mxu0 0.0
        %746 = vmatpush2.msra.mxu0 0.0
        %747 = vmatprep.subr.mxu0 0.0
        %748 = vmatpush2.msra.mxu0 0.0
        %749 = vmatprep.subr.mxu0 0.0
        %750 = vmatpush2.msra.mxu0 0.0
        %751 = vmatprep.subr.mxu0 0.0
        %752 = vmatpush2.msra.mxu0 0.0
        %753 = vmatprep.mubr.f32.mxu0 0.0
        %754 = vmatmul.mubr.f32.gmra.mxu0 %v586
        %v755 = vpop.f32.mrf.mxu0
        %v756 = vadd.f32 %v686, %v755
        %v757 = vpop.f32.mrf.mxu0
        %758 = vdwg.mxu0
        %v759 = vld [vmem:[%s5] sm:$0x1]
        %v761 = vlaneseq
        %v762 = vshrl.u32 %v761, 7
        %v763 = vsub.s32 0, %v762
        %v764 = vrot.slane %v759, %v763
        %v766 = vadd.f32 %v756, %v764
        %v767 = vsub.f32 0.0, %v766
        %v768 = vmul.f32 %v767, 1.442695
        %v769 = vpow.pop %v768
        %v770 = vadd.f32 %v769, 1.0
        %v771 = vrcp.pop %v770
        %v772 = vmul.f32 %v766, %v771
        %v773 = vld [vmem:[#allocation11] sm:$0xff]
        %v774 = vld [vmem:[#allocation11 + $0x8] sm:$0xff]
        %v775 = vld [vmem:[#allocation11 + $0x10] sm:$0xff]
        %v776 = vld [vmem:[#allocation11 + $0x18] sm:$0xff]
        %v777 = vld [vmem:[#allocation11 + $0x20] sm:$0xff]
        %v778 = vld [vmem:[#allocation11 + $0x28] sm:$0xff]
        %v779 = vld [vmem:[#allocation11 + $0x30] sm:$0xff]
        %v780 = vld [vmem:[#allocation11 + $0x38] sm:$0xff]
        %v781 = vld [vmem:[#allocation11 + $0x40] sm:$0xff]
        %v782 = vld [vmem:[#allocation11 + $0x48] sm:$0xff]
        %v783 = vld [vmem:[#allocation11 + $0x50] sm:$0xff]
        %v784 = vld [vmem:[#allocation11 + $0x58] sm:$0xff]
        %v785 = vld [vmem:[#allocation11 + $0x60] sm:$0xff]
        %v786 = vld [vmem:[#allocation11 + $0x68] sm:$0xff]
        %v787 = vld [vmem:[#allocation11 + $0x70] sm:$0xff]
        %v788 = vld [vmem:[#allocation11 + $0x78] sm:$0xff]
        %v789 = vld [vmem:[#allocation11 + $0x80] sm:$0xff]
        %v790 = vld [vmem:[#allocation11 + $0x88] sm:$0xff]
        %v791 = vld [vmem:[#allocation11 + $0x90] sm:$0xff]
        %v792 = vld [vmem:[#allocation11 + $0x98] sm:$0xff]
        %v793 = vld [vmem:[#allocation11 + $0xa0] sm:$0xff]
        %v794 = vld [vmem:[#allocation11 + $0xa8] sm:$0xff]
        %v795 = vld [vmem:[#allocation11 + $0xb0] sm:$0xff]
        %v796 = vld [vmem:[#allocation11 + $0xb8] sm:$0xff]
        %v797 = vld [vmem:[#allocation11 + $0xc0] sm:$0xff]
        %v798 = vld [vmem:[#allocation11 + $0xc8] sm:$0xff]
        %v799 = vld [vmem:[#allocation11 + $0xd0] sm:$0xff]
        %v800 = vld [vmem:[#allocation11 + $0xd8] sm:$0xff]
        %v801 = vld [vmem:[#allocation11 + $0xe0] sm:$0xff]
        %v802 = vld [vmem:[#allocation11 + $0xe8] sm:$0xff]
        %v803 = vld [vmem:[#allocation11 + $0xf0] sm:$0xff]
        %v804 = vld [vmem:[#allocation11 + $0xf8] sm:$0xff]
        %v805 = vld [vmem:[%s7] sm:$0x3]
        %v807 = vlaneseq
        %v808 = vshrl.u32 %v807, 7
        %v809 = vsub.s32 0, %v808
        %v810 = vrot.slane %v805, %v809
        %v811 = vlaneseq
        %v812 = vshrl.u32 %v811, 7
        %v813 = vsub.s32 1, %v812
        %v814 = vrot.slane %v805, %v813
        %817 = vmatprep.subr.mxu0 %v804
        %818 = vmatpush1.msra.mxu0 %v803
        %819 = vmatprep.subr.mxu0 %v802
        %820 = vmatpush1.msra.mxu0 %v801
        %821 = vmatprep.subr.mxu0 %v800
        %822 = vmatpush1.msra.mxu0 %v799
        %823 = vmatprep.subr.mxu0 %v798
        %824 = vmatpush1.msra.mxu0 %v797
        %825 = vmatprep.subr.mxu0 %v796
        %826 = vmatpush1.msra.mxu0 %v795
        %827 = vmatprep.subr.mxu0 %v794
        %828 = vmatpush1.msra.mxu0 %v793
        %829 = vmatprep.subr.mxu0 %v792
        %830 = vmatpush1.msra.mxu0 %v791
        %831 = vmatprep.subr.mxu0 %v790
        %832 = vmatpush1.msra.mxu0 %v789
        %833 = vmatprep.subr.mxu0 %v788
        %834 = vmatpush1.msra.mxu0 %v787
        %835 = vmatprep.subr.mxu0 %v786
        %836 = vmatpush1.msra.mxu0 %v785
        %837 = vmatprep.subr.mxu0 %v784
        %838 = vmatpush1.msra.mxu0 %v783
        %839 = vmatprep.subr.mxu0 %v782
        %840 = vmatpush1.msra.mxu0 %v781
        %841 = vmatprep.subr.mxu0 %v780
        %842 = vmatpush1.msra.mxu0 %v779
        %843 = vmatprep.subr.mxu0 %v778
        %844 = vmatpush1.msra.mxu0 %v777
        %845 = vmatprep.subr.mxu0 %v776
        %846 = vmatpush1.msra.mxu0 %v775
        %847 = vmatprep.subr.mxu0 %v774
        %848 = vmatpush1.msra.mxu0 %v773
        %849 = vmatprep.subr.mxu0 0.0
        %850 = vmatpush2.msra.mxu0 0.0
        %851 = vmatprep.subr.mxu0 0.0
        %852 = vmatpush2.msra.mxu0 0.0
        %853 = vmatprep.subr.mxu0 0.0
        %854 = vmatpush2.msra.mxu0 0.0
        %855 = vmatprep.subr.mxu0 0.0
        %856 = vmatpush2.msra.mxu0 0.0
        %857 = vmatprep.subr.mxu0 0.0
        %858 = vmatpush2.msra.mxu0 0.0
        %859 = vmatprep.subr.mxu0 0.0
        %860 = vmatpush2.msra.mxu0 0.0
        %861 = vmatprep.subr.mxu0 0.0
        %862 = vmatpush2.msra.mxu0 0.0
        %863 = vmatprep.subr.mxu0 0.0
        %864 = vmatpush2.msra.mxu0 0.0
        %865 = vmatprep.subr.mxu0 0.0
        %866 = vmatpush2.msra.mxu0 0.0
        %867 = vmatprep.subr.mxu0 0.0
        %868 = vmatpush2.msra.mxu0 0.0
        %869 = vmatprep.subr.mxu0 0.0
        %870 = vmatpush2.msra.mxu0 0.0
        %871 = vmatprep.subr.mxu0 0.0
        %872 = vmatpush2.msra.mxu0 0.0
        %873 = vmatprep.subr.mxu0 0.0
        %874 = vmatpush2.msra.mxu0 0.0
        %875 = vmatprep.subr.mxu0 0.0
        %876 = vmatpush2.msra.mxu0 0.0
        %877 = vmatprep.subr.mxu0 0.0
        %878 = vmatpush2.msra.mxu0 0.0
        %879 = vmatprep.subr.mxu0 0.0
        %880 = vmatpush2.msra.mxu0 0.0
        %881 = vmatprep.mubr.f32.mxu0 0.0
        %882 = vmatmul.mubr.f32.gmra.mxu0 %v772
        %v883 = vpop.f32.mrf.mxu0
        %v884 = vadd.f32 %v810, %v883
        %v885 = vpop.f32.mrf.mxu0
        %v886 = vadd.f32 %v814, %v885
        %887 = vdwg.mxu0
        %v888 = vsub.f32 0.0, %v884
        %v889 = vmul.f32 %v888, 1.442695
        %v890 = vpow.pop %v889
        %v891 = vadd.f32 %v890, 1.0
        %v892 = vrcp.pop %v891
        %v893 = vmul.f32 %v884, %v892
        %894 = vst [vmem:[%s448] sm:$0xff] %v893
        %v895 = vmul.f32 %v886, %v560
        %v896 = vmul.f32 %v886, %v566
        %v897 = vmul.f32 %v886, %v572
        %898 = vst [vmem:[%s455] sm:$0xff] %v895
        %899 = vst [vmem:[%s455 + $0x8] sm:$0xff] %v896
        %900 = vst [vmem:[%s455 + $0x10] sm:$0xff] %v897
        %s901 = sand.u32 %s221, 1
        %s902 = scalar_lea.sflag [#allocation4], %s901
        %s903 = sand.u32 %s221, 1
        %s904 = smul.addr %s903, 8
        %s905 = scalar_lea.vmem [#allocation13], %s904
        %s906 = sand.u32 %s247, 1
        %s907 = scalar_lea.sflag [#allocation15], %s906
        %s908 = sand.u32 %s247, 1
        %s909 = smul.addr %s908, 24
        %s910 = scalar_lea.vmem [#allocation14], %s909
        // Predicated region
        $region77: #{tpu_custom_call.1} parent=51 // pred_check
          %p911 = pneg %p231
        $region78: #{tpu_custom_call.1} parent=51 // pred_check_branch
          %913 = sbr.rel (%p911) target = $region80
        $region79: #{tpu_custom_call.1} parent=51 // pred_region
          %s915 = ssub.s32 128, 128
          %916 = vsyncadd %s902, %s915
          %s917 = smul.addr %s35, 128
          %s918 = scalar_lea.hbm %s8, %s917
          %s920 = sshll.u32 %s905, 4
          %s921 = int_to_ptr.vmem [resolvable:$true] %s920
          %923 = dma.vmem_to_hbm [thread:$0]  %s921, 128, %s918, %s902
        $region80: #{tpu_custom_call.1} parent=51 // pred_fallthru
          _
        // Predicated region
        $region81: #{tpu_custom_call.1} parent=51 // pred_check
          %p924 = pneg %p257
        $region82: #{tpu_custom_call.1} parent=51 // pred_check_branch
          %926 = sbr.rel (%p924) target = $region84
        $region83: #{tpu_custom_call.1} parent=51 // pred_region
          %s928 = ssub.s32 384, 384
          %929 = vsyncadd %s907, %s928
          %s930 = smul.addr %s35, 128
          %s931 = scalar_lea.hbm %s9, %s930
          %s932 = sshll.u32 %s910, 4
          %s933 = int_to_ptr.vmem [resolvable:$true] %s932
          %938 = dma.vmem_to_hbm [thread:$0]  %s933, 384, %s931, %s907, 128, 256, 8
        $region84: #{tpu_custom_call.1} parent=51 // pred_fallthru
          _
      $region52: #{tpu_custom_call.1} parent=5 // pred_fallthru
        _
      %p939 = scmp.le.s32.totalorder 2, %s30
      // Predicated region
      $region85: #{tpu_custom_call.1} parent=5 // pred_check
        %p940 = pneg %p939
      $region86: #{tpu_custom_call.1} parent=5 // pred_check_branch
        %942 = sbr.rel (%p940) target = $region88
      $region87: #{tpu_custom_call.1} parent=5 // pred_region
        %s943 = ssub.s32 %s30, 2
        // Predicated region
        $region89: #{tpu_custom_call.1} parent=87 // pred_check
          %p944 = pneg %p237
        $region90: #{tpu_custom_call.1} parent=87 // pred_check_branch
          %946 = sbr.rel (%p944) target = $region92
        $region91: #{tpu_custom_call.1} parent=87 // pred_region
          %s947 = sand.u32 %s222, 1
          %s948 = scalar_lea.sflag [#allocation4], %s947
          %s949 = sand.u32 %s222, 1
          %s950 = smul.addr %s949, 8
          %s951 = scalar_lea.vmem [#allocation13], %s950
          %952 = dma.done %s948, 128
        $region92: #{tpu_custom_call.1} parent=87 // pred_fallthru
          _
        // Predicated region
        $region93: #{tpu_custom_call.1} parent=87 // pred_check
          %p953 = pneg %p263
        $region94: #{tpu_custom_call.1} parent=87 // pred_check_branch
          %955 = sbr.rel (%p953) target = $region96
        $region95: #{tpu_custom_call.1} parent=87 // pred_region
          %s956 = sand.u32 %s248, 1
          %s957 = scalar_lea.sflag [#allocation15], %s956
          %s958 = sand.u32 %s248, 1
          %s959 = smul.addr %s958, 24
          %s960 = scalar_lea.vmem [#allocation14], %s959
          %961 = dma.done %s957, 384
        $region96: #{tpu_custom_call.1} parent=87 // pred_fallthru
          _
      $region88: #{tpu_custom_call.1} parent=5 // pred_fallthru
        _
    $region6: #{tpu_custom_call.1} parent=1 // loop_footer
      %s34 = sadd.s32 1, %s30
    $region7: #{tpu_custom_call.1} parent=1 // loop_footer_branch
      %29 = sbr.rel target = $region3
    $region8: #{tpu_custom_call.1} parent=1 // loop_exit
      _
    %962 = vsyncpa [#allocation3], 1
    %s963 = scalar_lea.sflag [#allocation3], 1
    %964 = vsyncpa %s963, 1
    %965 = vsyncpa [#allocation6], 1
    %s966 = scalar_lea.sflag [#allocation6], 1
    %967 = vsyncpa %s966, 1
    %968 = vsyncpa [#allocation9], 1
    %969 = vsyncpa [#allocation12], 1
    %970 = vsyncpa [#allocation4], 1
    %s971 = scalar_lea.sflag [#allocation4], 1
    %972 = vsyncpa %s971, 1
    %973 = vsyncpa [#allocation15], 1
    %s974 = scalar_lea.sflag [#allocation15], 1
    %975 = vsyncpa %s974, 1

</llo_original>
